<compile_context>
chip_gen: v7x
topology: tpu7x:2x2x1
jax: 0.10.0
libtpu: 0.0.40
codegen_flags: <defaults>
</compile_context>

<pallas_src>
import functools
from typing import Any, NamedTuple

import jax
import jax.numpy as jnp
from jax.experimental import pallas as pl
from jax.experimental.pallas import tpu as pltpu


def _round_up(x, m):
    return (x + m - 1) // m * m


def _pad2(x, r, c):
    pr, pc = r - x.shape[0], c - x.shape[1]
    if pr == 0 and pc == 0:
        return x
    return jnp.pad(x, ((0, pr), (0, pc)))


def _pick_c_tile(c_pad, max_c_tile):
    """Largest multiple of 128 that divides c_pad and is <= max_c_tile."""
    best = 128
    t = 128
    while t <= min(c_pad, max_c_tile):
        if c_pad % t == 0:
            best = t
        t += 128
    return best


class PreparedGRUParams(NamedTuple):
    w_stack: jax.Array   # (3*r_pad, r_pad) mxu_dtype; z/r rows hold (Wg+Ug)
    uh: jax.Array        # (r_pad, r_pad)   mxu_dtype
    b_stack: jax.Array   # (3*r_pad, c_pad) bias dtype (== mxu_dtype by default)
    rows: int
    cols: int
    r_pad: int
    c_pad: int
    c_tile: int
    mxu_dtype: Any


def prepare_params(params, rows, cols, *, mxu_dtype=jnp.bfloat16,
                   bias_dtype=None, max_c_tile=512):
    """One-time constant prep, hoisted off the per-step path.

    Production should use the default mxu_dtype=bfloat16 (v5e's MXU has no
    native f32; f32 is for correctness tests only).
    """
    if bias_dtype is None:
        bias_dtype = mxu_dtype        # bf16 biases in production: halves bias DMA
    r_pad = _round_up(rows, 16)       # covers f32 (8) and bf16 (16) sublane tiles
    c_pad = _round_up(cols, 128)      # lane-dense only; no extra tile rounding
    c_tile = _pick_c_tile(c_pad, max_c_tile)

    f32 = jnp.float32
    # Fold Wg@Q + Ug@Q -> (Wg+Ug)@Q for z/r (in f32, then cast once).
    w_z = params["Wz"].astype(f32) + params["Uz"].astype(f32)
    w_r = params["Wr"].astype(f32) + params["Ur"].astype(f32)
    w_h = params["Wh"].astype(f32)
    w_stack = jnp.concatenate(
        [_pad2(w_z, r_pad, r_pad), _pad2(w_r, r_pad, r_pad),
         _pad2(w_h, r_pad, r_pad)], axis=0).astype(mxu_dtype)        # (3R', R')
    uh = _pad2(params["Uh"].astype(f32), r_pad, r_pad).astype(mxu_dtype)
    b_stack = jnp.concatenate(
        [_pad2(params["bz"].astype(f32), r_pad, c_pad),
         _pad2(params["br"].astype(f32), r_pad, c_pad),
         _pad2(params["bh"].astype(f32), r_pad, c_pad)],
        axis=0).astype(bias_dtype)                                    # (3R', C')
    return PreparedGRUParams(w_stack, uh, b_stack, rows, cols,
                             r_pad, c_pad, c_tile, mxu_dtype)


def _gru_cell_kernel(q_ref, w_ref, uh_ref, b_ref, out_ref, *, rows, mxu_dtype):
    # q: (R', Ct) f32; w: (3R', R'); uh: (R', R'); b: (3R', Ct); out: (R', Ct).
    q = q_ref[...]
    q_m = q.astype(mxu_dtype)

    # One stacked MXU matmul for all three gate pre-activations (f32 accum),
    # biases upcast from their storage dtype at add time.
    pre = jnp.dot(w_ref[...], q_m, preferred_element_type=jnp.float32)
    pre = pre + b_ref[...].astype(jnp.float32)

    # sigmoid(x) == 0.5*tanh(0.5*x) + 0.5 : one EUP push instead of exp+recip;
    # the mul/add ride in otherwise-idle VALU slots.
    update = 0.5 * jnp.tanh(0.5 * pre[:rows, :]) + 0.5           # z gate
    reset = 0.5 * jnp.tanh(0.5 * pre[rows:2 * rows, :]) + 0.5    # r gate

    # Candidate: tanh((Wh@Q + bh) + Uh @ (r*Q)) -- the only dependent matmul.
    rq = (reset * q).astype(mxu_dtype)
    h_cap = jnp.tanh(pre[2 * rows:, :]
                     + jnp.dot(uh_ref[...], rq,
                               preferred_element_type=jnp.float32))

    # new_Q = (1 - z)*Q + z*h_cap  ==  Q + z*(h_cap - Q)
    out_ref[...] = (q + update * (h_cap - q)).astype(out_ref.dtype)
    # TODO(synk): if bundle dumps show vld/vst slot saturation at large
    # c_tile, stage `pre` in a VMEM scratch and walk it in 128-col sub-chunks.


def mat_gru_cell_padded(q_pad, prep: PreparedGRUParams):
    """Fast recurrent path: Q already padded to (r_pad, c_pad) f32; returns
    the padded f32 new_Q (feed it straight into the next step)."""
    r_pad, c_pad, c_tile = prep.r_pad, prep.c_pad, prep.c_tile
    assert q_pad.shape == (r_pad, c_pad)
    n_ct = c_pad // c_tile

    kernel = functools.partial(_gru_cell_kernel, rows=r_pad,
                               mxu_dtype=prep.mxu_dtype)

    cost = pl.CostEstimate(
        flops=int(2 * (3 * r_pad) * r_pad * c_pad        # stacked gate matmul
                  + 2 * r_pad * r_pad * c_pad            # Uh @ (r*Q)
                  + 12 * r_pad * c_pad),                 # gate/blend VPU work
        transcendentals=int(3 * r_pad * c_pad),
        bytes_accessed=int(q_pad.nbytes + prep.w_stack.nbytes + prep.uh.nbytes
                           + prep.b_stack.nbytes + r_pad * c_pad * 4),
    )

    # Only raise the scoped-VMEM limit when a big c_tile actually needs it
    # (keeps the default safe under v7x's 64 MiB physical VMEM).
    bpe_b = jnp.dtype(prep.b_stack.dtype).itemsize
    bpe_w = jnp.dtype(prep.mxu_dtype).itemsize
    tile_bytes = (2 * (r_pad * c_tile * 4                 # Q in (dbl-buffered)
                       + 3 * r_pad * c_tile * bpe_b       # bias in
                       + r_pad * c_tile * 4)              # out
                  + 4 * r_pad * r_pad * bpe_w             # resident weights
                  + 2 * 3 * r_pad * c_tile * 4)           # in-kernel pre/temps
    vmem_limit = None
    if tile_bytes > 24 * 2 ** 20:
        vmem_limit = min(int(tile_bytes * 3 // 2), 100 * 2 ** 20)

    return pl.pallas_call(
        kernel,
        out_shape=jax.ShapeDtypeStruct((r_pad, c_pad), q_pad.dtype),
        grid_spec=pltpu.PrefetchScalarGridSpec(
            num_scalar_prefetch=0,
            grid=(n_ct,),
            in_specs=[
                pl.BlockSpec((r_pad, c_tile), lambda j: (0, j)),        # Q tile
                pl.BlockSpec((3 * r_pad, r_pad), lambda j: (0, 0),
                             pipeline_mode=pl.Buffered(1)),             # W stack
                pl.BlockSpec((r_pad, r_pad), lambda j: (0, 0),
                             pipeline_mode=pl.Buffered(1)),             # Uh
                pl.BlockSpec((3 * r_pad, c_tile), lambda j: (0, j)),    # bias tile
            ],
            out_specs=pl.BlockSpec((r_pad, c_tile), lambda j: (0, j)),
        ),
        compiler_params=pltpu.CompilerParams(
            dimension_semantics=("parallel",),
            vmem_limit_bytes=vmem_limit),
        cost_estimate=cost,
    )(q_pad, prep.w_stack, prep.uh, prep.b_stack)


def mat_gru_cell(prev_q, params, *, mxu_dtype=jnp.bfloat16, bias_dtype=None,
                 max_c_tile=512):
    """Single-step convenience entry point.

    `params` may be a PreparedGRUParams (fast; prepare once, reuse every step)
    or the raw dict {Wz,Uz,bz,Wr,Ur,br,Wh,Uh,bh} (constant prep re-done per
    call -- avoid in recurrent loops).  For recurrent use, prefer keeping Q
    padded and calling mat_gru_cell_padded directly.
    """
    rows, cols = prev_q.shape
    if isinstance(params, PreparedGRUParams):
        prep = params
        assert (rows, cols) == (prep.rows, prep.cols)
    else:
        prep = prepare_params(params, rows, cols, mxu_dtype=mxu_dtype,
                              bias_dtype=bias_dtype, max_c_tile=max_c_tile)
    q_pad = _pad2(prev_q.astype(jnp.float32), prep.r_pad, prep.c_pad)
    out_pad = mat_gru_cell_padded(q_pad, prep)
    return out_pad[:rows, :cols].astype(prev_q.dtype)


def mat_gru_cell_ref(prev_q, params):
    q = prev_q.astype(jnp.float32)
    z = jax.nn.sigmoid(params["Wz"] @ q + params["Uz"] @ q + params["bz"])
    r = jax.nn.sigmoid(params["Wr"] @ q + params["Ur"] @ q + params["br"])
    h = jnp.tanh(params["Wh"] @ q + params["Uh"] @ (r * q) + params["bh"])
    return ((1.0 - z) * q + z * h).astype(prev_q.dtype)


def make_params(key, rows, cols, dtype=jnp.float32):
    # PyTorch __init__ uses zeros; small random values exercise the full path.
    names = ["Wz", "Uz", "bz", "Wr", "Ur", "br", "Wh", "Uh", "bh"]
    shapes = {
        "Wz": (rows, rows), "Uz": (rows, rows), "bz": (rows, cols),
        "Wr": (rows, rows), "Ur": (rows, rows), "br": (rows, cols),
        "Wh": (rows, rows), "Uh": (rows, rows), "bh": (rows, cols),
    }
    keys = jax.random.split(key, len(names))
    return {n: (0.1 * jax.random.normal(k, shapes[n], dtype=dtype))
            for n, k in zip(names, keys)}


if __name__ == "__main__":
    # Small analogue of the real (162, 100) problem: unaligned rows AND cols,
    # so the padding path (rows->48, cols->128) is exercised.
    ROWS, COLS = 36, 100

    root = jax.random.PRNGKey(0)
    k_q, k_p = jax.random.split(root)
    prev_Q = jax.random.normal(k_q, (ROWS, COLS), dtype=jnp.float32)
    params = make_params(k_p, ROWS, COLS)
    ref = mat_gru_cell_ref(prev_Q, params)

    # f32-MXU path (tests only): tight check against the reference.
    prep_f32 = prepare_params(params, ROWS, COLS, mxu_dtype=jnp.float32)
    out_f32 = jax.block_until_ready(mat_gru_cell(prev_Q, prep_f32))
    assert out_f32.shape == (ROWS, COLS)
    err_f32 = jnp.max(jnp.abs(out_f32 - ref))
    assert jnp.allclose(out_f32, ref, atol=2e-4, rtol=2e-4), \
        f"f32 path max abs err {err_f32}"

    # bf16-MXU + bf16-bias path (production default): loose check.
    prep_bf16 = prepare_params(params, ROWS, COLS)
    out_bf16 = jax.block_until_ready(mat_gru_cell(prev_Q, prep_bf16))
    assert out_bf16.shape == (ROWS, COLS)
    err_bf16 = jnp.max(jnp.abs(out_bf16 - ref))
    assert jnp.allclose(out_bf16, ref, atol=5e-2, rtol=5e-2), \
        f"bf16 path max abs err {err_bf16}"

    # Recurrent padded path with a multi-tile grid: C=1000 -> c_pad=1024,
    # c_tile=512, n_ct=2.  Q stays padded between steps; prep done once.
    ROWS2, COLS2, STEPS = 36, 1000, 3
    k_q2, k_p2 = jax.random.split(jax.random.PRNGKey(1))
    q0 = jax.random.normal(k_q2, (ROWS2, COLS2), dtype=jnp.float32)
    params2 = make_params(k_p2, ROWS2, COLS2)
    prep2 = prepare_params(params2, ROWS2, COLS2, mxu_dtype=jnp.float32)

    step = jax.jit(lambda qp: mat_gru_cell_padded(qp, prep2))
    q_pad = _pad2(q0, prep2.r_pad, prep2.c_pad)
    for _ in range(STEPS):
        q_pad = step(q_pad)
    out_rec = jax.block_until_ready(q_pad[:ROWS2, :COLS2])

    ref_rec = q0
    for _ in range(STEPS):
        ref_rec = mat_gru_cell_ref(ref_rec, params2)
    err_rec = jnp.max(jnp.abs(out_rec - ref_rec))
    assert jnp.allclose(out_rec, ref_rec, atol=2e-3, rtol=2e-3), \
        f"recurrent path max abs err {err_rec}"

    print("KERNEL_OK")
</pallas_src>

<mosaic_0001>
module attributes {stable_mosaic.version = 11 : i64} {
  func.func @_gru_cell_kernel(%arg0: i32, %arg1: memref<48x128xf32, #tpu.memory_space<vmem>>, %arg2: memref<144x48xf32, #tpu.memory_space<vmem>>, %arg3: memref<48x48xf32, #tpu.memory_space<vmem>>, %arg4: memref<144x128xf32, #tpu.memory_space<vmem>>, %arg5: memref<48x128xf32, #tpu.memory_space<vmem>>) attributes {dimension_semantics = [#tpu.dimension_semantics<parallel>], iteration_bounds = array<i64: 1>, scalar_prefetch = 0 : i64, scratch_operands = 0 : i64, tpu.core_type = #tpu.core_type<tc>, window_params = [{transform_indices = @transform_0, window_bounds = array<i64: 48, 128>}, {pipeline_mode = #tpu.pipeline_mode<synchronous>, transform_indices = @transform_1, window_bounds = array<i64: 144, 48>}, {pipeline_mode = #tpu.pipeline_mode<synchronous>, transform_indices = @transform_2, window_bounds = array<i64: 48, 48>}, {transform_indices = @transform_3, window_bounds = array<i64: 144, 128>}, {transform_indices = @transform_4, window_bounds = array<i64: 48, 128>}]} {
    %c0 = arith.constant 0 : index
    %c0_0 = arith.constant 0 : index
    %0 = vector.load %arg1[%c0, %c0_0] : memref<48x128xf32, #tpu.memory_space<vmem>>, vector<48x128xf32>
    %c0_1 = arith.constant 0 : index
    %c0_2 = arith.constant 0 : index
    %1 = vector.load %arg2[%c0_1, %c0_2] : memref<144x48xf32, #tpu.memory_space<vmem>>, vector<144x48xf32>
    %cst = arith.constant dense<0.000000e+00> : vector<144x128xf32>
    %2 = tpu.matmul %1, %0, %cst {dimension_numbers = #tpu.dot_dimension_numbers<[1], [0], [0], [1], [0, 0, 1, 1], [], []>} : vector<144x48xf32>, vector<48x128xf32>, vector<144x128xf32> -> vector<144x128xf32>
    %c0_3 = arith.constant 0 : index
    %c0_4 = arith.constant 0 : index
    %3 = vector.load %arg4[%c0_3, %c0_4] : memref<144x128xf32, #tpu.memory_space<vmem>>, vector<144x128xf32>
    %4 = arith.addf %2, %3 : vector<144x128xf32>
    %5 = vector.extract_strided_slice %4 {offsets = [0, 0], sizes = [48, 128], strides = [1, 1]} : vector<144x128xf32> to vector<48x128xf32>
    %cst_5 = arith.constant 5.000000e-01 : f32
    %6 = vector.broadcast %cst_5 : f32 to vector<48x128xf32>
    %7 = arith.mulf %6, %5 : vector<48x128xf32>
    %8 = math.tanh %7 : vector<48x128xf32>
    %cst_6 = arith.constant 5.000000e-01 : f32
    %9 = vector.broadcast %cst_6 : f32 to vector<48x128xf32>
    %10 = arith.mulf %9, %8 : vector<48x128xf32>
    %cst_7 = arith.constant 5.000000e-01 : f32
    %11 = vector.broadcast %cst_7 : f32 to vector<48x128xf32>
    %12 = arith.addf %10, %11 : vector<48x128xf32>
    %13 = vector.extract_strided_slice %4 {offsets = [48, 0], sizes = [48, 128], strides = [1, 1]} : vector<144x128xf32> to vector<48x128xf32>
    %cst_8 = arith.constant 5.000000e-01 : f32
    %14 = vector.broadcast %cst_8 : f32 to vector<48x128xf32>
    %15 = arith.mulf %14, %13 : vector<48x128xf32>
    %16 = math.tanh %15 : vector<48x128xf32>
    %cst_9 = arith.constant 5.000000e-01 : f32
    %17 = vector.broadcast %cst_9 : f32 to vector<48x128xf32>
    %18 = arith.mulf %17, %16 : vector<48x128xf32>
    %cst_10 = arith.constant 5.000000e-01 : f32
    %19 = vector.broadcast %cst_10 : f32 to vector<48x128xf32>
    %20 = arith.addf %18, %19 : vector<48x128xf32>
    %21 = arith.mulf %20, %0 : vector<48x128xf32>
    %22 = vector.extract_strided_slice %4 {offsets = [96, 0], sizes = [48, 128], strides = [1, 1]} : vector<144x128xf32> to vector<48x128xf32>
    %c0_11 = arith.constant 0 : index
    %c0_12 = arith.constant 0 : index
    %23 = vector.load %arg3[%c0_11, %c0_12] : memref<48x48xf32, #tpu.memory_space<vmem>>, vector<48x48xf32>
    %cst_13 = arith.constant dense<0.000000e+00> : vector<48x128xf32>
    %24 = tpu.matmul %23, %21, %cst_13 {dimension_numbers = #tpu.dot_dimension_numbers<[1], [0], [0], [1], [0, 0, 1, 1], [], []>} : vector<48x48xf32>, vector<48x128xf32>, vector<48x128xf32> -> vector<48x128xf32>
    %25 = arith.addf %22, %24 : vector<48x128xf32>
    %26 = math.tanh %25 : vector<48x128xf32>
    %27 = arith.subf %26, %0 : vector<48x128xf32>
    %28 = arith.mulf %12, %27 : vector<48x128xf32>
    %29 = arith.addf %0, %28 : vector<48x128xf32>
    %c0_14 = arith.constant 0 : index
    %c0_15 = arith.constant 0 : index
    %30 = vector.load %arg5[%c0_14, %c0_15] : memref<48x128xf32, #tpu.memory_space<vmem>>, vector<48x128xf32>
    tpu.vector_store %arg5[%c0_14, %c0_15], %29 {strides = array<i32>} : memref<48x128xf32, #tpu.memory_space<vmem>>, vector<48x128xf32>,
    return
  }
  func.func @transform_0(%arg0: i32) -> (i32, i32) {
    %c0_i32 = arith.constant 0 : i32
    %c0_i32_0 = arith.constant 0 : i32
    return %c0_i32, %arg0 : i32, i32
  }
  func.func @transform_1(%arg0: i32) -> (i32, i32) {
    %c0_i32 = arith.constant 0 : i32
    %c0_i32_0 = arith.constant 0 : i32
    %c0_i32_1 = arith.constant 0 : i32
    return %c0_i32, %c0_i32_0 : i32, i32
  }
  func.func @transform_2(%arg0: i32) -> (i32, i32) {
    %c0_i32 = arith.constant 0 : i32
    %c0_i32_0 = arith.constant 0 : i32
    %c0_i32_1 = arith.constant 0 : i32
    return %c0_i32, %c0_i32_0 : i32, i32
  }
  func.func @transform_3(%arg0: i32) -> (i32, i32) {
    %c0_i32 = arith.constant 0 : i32
    %c0_i32_0 = arith.constant 0 : i32
    return %c0_i32, %arg0 : i32, i32
  }
  func.func @transform_4(%arg0: i32) -> (i32, i32) {
    %c0_i32 = arith.constant 0 : i32
    %c0_i32_0 = arith.constant 0 : i32
    return %c0_i32, %arg0 : i32, i32
  }
}

</mosaic_0001>

<llo_original>
// kernel: tpu_custom_call.1
$region0: #{tpu_custom_call.1}
  #allocation0 [shape = 'u32[]', space=smem, size = 0x4, offset = 0x4, fixed_abs, tag = 'smem constant byte address 0x4 - core index']
  #allocation1 [shape = 'u32[144,128]{1,0:T(1,128)}', space=vmem, size = 0x12000, scoped, tag = 'internal scratch']
  %s0 = inlined_call_operand.vmem [shape: f32[48,128], index: 0, kind: input, shape index: {}]
  %s1 = inlined_call_operand.vmem [shape: f32[144,48], index: 1, kind: input, shape index: {}]
  %s2 = inlined_call_operand.vmem [shape: f32[48,48], index: 2, kind: input, shape index: {}]
  %s3 = inlined_call_operand.vmem [shape: f32[144,128], index: 3, kind: input, shape index: {}]
  %s4 = inlined_call_operand.hbm [shape: f32[48,128], index: 4, kind: output, shape index: {}]
  %s5 = sld [smem:[#allocation0]]
  $region26: #{tpu_custom_call.1} parent=0
    _
  %s7 = ssub.s32 1, %s5
  %s8 = scalar_select 0, %s7, %s5
  $region1: #{tpu_custom_call.1} parent=0
    #allocation2 [shape = 'u8[24576]{0}', space=vmem, size = 0x6000, scoped, tag = 'output window, operand 0, single buffered']
    #allocation3 [shape = 's32[1]{0}', space=sflag, size = 0x4, scoped, tag = 'scoped memory for tpu_custom_call.1']
    %9 = vsyncpa [#allocation3], 0
    // Predicated region
    $region2: #{tpu_custom_call.1} parent=1 // pred_check
      _
    $region3: #{tpu_custom_call.1} parent=1 // pred_check_branch
      %11 = sbr.rel (0) target = $region5
    $region4: #{tpu_custom_call.1} parent=1 // pred_region
      _
    $region5: #{tpu_custom_call.1} parent=1 // pred_fallthru
      _
    // Predicated region
    $region6: #{tpu_custom_call.1} parent=1 // pred_check
      _
    $region7: #{tpu_custom_call.1} parent=1 // pred_check_branch
      %13 = sbr.rel (0) target = $region9
    $region8: #{tpu_custom_call.1} parent=1 // pred_region
      _
    $region9: #{tpu_custom_call.1} parent=1 // pred_fallthru
      _
    // Predicated region
    $region10: #{tpu_custom_call.1} parent=1 // pred_check
      _
    $region11: #{tpu_custom_call.1} parent=1 // pred_check_branch
      %15 = sbr.rel (0) target = $region13
    $region12: #{tpu_custom_call.1} parent=1 // pred_region
      _
    $region13: #{tpu_custom_call.1} parent=1 // pred_fallthru
      _
    // Predicated region
    $region14: #{tpu_custom_call.1} parent=1 // pred_check
      _
    $region15: #{tpu_custom_call.1} parent=1 // pred_check_branch
      %17 = sbr.rel (0) target = $region17
    $region16: #{tpu_custom_call.1} parent=1 // pred_region
      _
    $region17: #{tpu_custom_call.1} parent=1 // pred_fallthru
      _
    %v18 = vld [vmem:[%s0] sm:$0xff]
    %v19 = vld [vmem:[%s0 + $0x8] sm:$0xff]
    %v20 = vld [vmem:[%s0 + $0x10] sm:$0xff]
    %v21 = vld [vmem:[%s0 + $0x18] sm:$0xff]
    %v22 = vld [vmem:[%s0 + $0x20] sm:$0xff]
    %v23 = vld [vmem:[%s0 + $0x28] sm:$0xff]
    %v24 = vld [vmem:[%s1] sm:$0xff]
    %v25 = vld [vmem:[%s1 + $0x8] sm:$0xff]
    %v26 = vld [vmem:[%s1 + $0x10] sm:$0xff]
    %v27 = vld [vmem:[%s1 + $0x18] sm:$0xff]
    %v28 = vld [vmem:[%s1 + $0x20] sm:$0xff]
    %v29 = vld [vmem:[%s1 + $0x28] sm:$0xff]
    %v30 = vld [vmem:[%s1 + $0x30] sm:$0xff]
    %v31 = vld [vmem:[%s1 + $0x38] sm:$0xff]
    %v32 = vld [vmem:[%s1 + $0x40] sm:$0xff]
    %v33 = vld [vmem:[%s1 + $0x48] sm:$0xff]
    %v34 = vld [vmem:[%s1 + $0x50] sm:$0xff]
    %v35 = vld [vmem:[%s1 + $0x58] sm:$0xff]
    %v36 = vld [vmem:[%s1 + $0x60] sm:$0xff]
    %v37 = vld [vmem:[%s1 + $0x68] sm:$0xff]
    %v38 = vld [vmem:[%s1 + $0x70] sm:$0xff]
    %v39 = vld [vmem:[%s1 + $0x78] sm:$0xff]
    %v40 = vld [vmem:[%s1 + $0x80] sm:$0xff]
    %v41 = vld [vmem:[%s1 + $0x88] sm:$0xff]
    %v42 = vld [vmem:[%s3] sm:$0xff]
    %v43 = vld [vmem:[%s3 + $0x8] sm:$0xff]
    %v44 = vld [vmem:[%s3 + $0x10] sm:$0xff]
    %v45 = vld [vmem:[%s3 + $0x18] sm:$0xff]
    %v46 = vld [vmem:[%s3 + $0x20] sm:$0xff]
    %v47 = vld [vmem:[%s3 + $0x28] sm:$0xff]
    %v48 = vld [vmem:[%s3 + $0x30] sm:$0xff]
    %v49 = vld [vmem:[%s3 + $0x38] sm:$0xff]
    %v50 = vld [vmem:[%s3 + $0x40] sm:$0xff]
    %v51 = vld [vmem:[%s3 + $0x48] sm:$0xff]
    %v52 = vld [vmem:[%s3 + $0x50] sm:$0xff]
    %v53 = vld [vmem:[%s3 + $0x58] sm:$0xff]
    %v54 = vld [vmem:[%s3 + $0x60] sm:$0xff]
    %v55 = vld [vmem:[%s3 + $0x68] sm:$0xff]
    %v56 = vld [vmem:[%s3 + $0x70] sm:$0xff]
    %v57 = vld [vmem:[%s3 + $0x78] sm:$0xff]
    %v58 = vld [vmem:[%s3 + $0x80] sm:$0xff]
    %v59 = vld [vmem:[%s3 + $0x88] sm:$0xff]
    %vm60 = vcmask 392192
    %v62 = vsel %vm60, %v24, 0
    %v65 = vsel %vm60, %v25, 0
    %v68 = vsel %vm60, %v26, 0
    %v71 = vsel %vm60, %v27, 0
    %v74 = vsel %vm60, %v28, 0
    %v77 = vsel %vm60, %v29, 0
    %v80 = vsel %vm60, %v30, 0
    %v83 = vsel %vm60, %v31, 0
    %v86 = vsel %vm60, %v32, 0
    %v89 = vsel %vm60, %v33, 0
    %v92 = vsel %vm60, %v34, 0
    %v95 = vsel %vm60, %v35, 0
    %v98 = vsel %vm60, %v36, 0
    %v101 = vsel %vm60, %v37, 0
    %v104 = vsel %vm60, %v38, 0
    %v107 = vsel %vm60, %v39, 0
    %v110 = vsel %vm60, %v40, 0
    %v113 = vsel %vm60, %v41, 0
    %115 = vmatprep.subr.mxu0 0.0
    %116 = vmatpush1.msra.mxu0 %v18
    %117 = vmatprep.subr.mxu0 0.0
    %118 = vmatpush1.msra.mxu0 %v19
    %119 = vmatprep.subr.mxu0 0.0
    %120 = vmatpush1.msra.mxu0 %v20
    %121 = vmatprep.subr.mxu0 0.0
    %122 = vmatpush1.msra.mxu0 %v21
    %123 = vmatprep.subr.mxu0 0.0
    %124 = vmatpush1.msra.mxu0 %v22
    %125 = vmatprep.subr.mxu0 0.0
    %126 = vmatpush1.msra.mxu0 %v23
    %127 = vmatprep.subr.mxu0 0.0
    %128 = vmatpush1.msra.mxu0 0.0
    %129 = vmatprep.subr.mxu0 0.0
    %130 = vmatpush1.msra.mxu0 0.0
    %131 = vmatprep.subr.mxu0 0.0
    %132 = vmatpush1.msra.mxu0 0.0
    %133 = vmatprep.subr.mxu0 0.0
    %134 = vmatpush1.msra.mxu0 0.0
    %135 = vmatprep.subr.mxu0 0.0
    %136 = vmatpush1.msra.mxu0 0.0
    %137 = vmatprep.subr.mxu0 0.0
    %138 = vmatpush1.msra.mxu0 0.0
    %139 = vmatprep.subr.mxu0 0.0
    %140 = vmatpush1.msra.mxu0 0.0
    %141 = vmatprep.subr.mxu0 0.0
    %142 = vmatpush1.msra.mxu0 0.0
    %143 = vmatprep.subr.mxu0 0.0
    %144 = vmatpush1.msra.mxu0 0.0
    %145 = vmatprep.subr.mxu0 0.0
    %146 = vmatpush1.msra.mxu0 0.0
    %147 = vmatprep.subr.mxu0 0.0
    %148 = vmatpush1.msra.mxu0 0.0
    %149 = vmatprep.subr.mxu0 0.0
    %150 = vmatpush1.msra.mxu0 0.0
    %151 = vmatprep.subr.mxu0 0.0
    %152 = vmatpush1.msra.mxu0 0.0
    %153 = vmatprep.subr.mxu0 0.0
    %154 = vmatpush1.msra.mxu0 0.0
    %155 = vmatprep.subr.mxu0 0.0
    %156 = vmatpush1.msra.mxu0 0.0
    %157 = vmatprep.subr.mxu0 0.0
    %158 = vmatpush1.msra.mxu0 0.0
    %159 = vmatprep.subr.mxu0 0.0
    %160 = vmatpush1.msra.mxu0 0.0
    %161 = vmatprep.subr.mxu0 0.0
    %162 = vmatpush1.msra.mxu0 0.0
    %163 = vmatprep.subr.mxu0 0.0
    %164 = vmatpush1.msra.mxu0 0.0
    %165 = vmatprep.subr.mxu0 0.0
    %166 = vmatpush1.msra.mxu0 0.0
    %167 = vmatprep.subr.mxu0 0.0
    %168 = vmatpush1.msra.mxu0 0.0
    %169 = vmatprep.subr.mxu0 0.0
    %170 = vmatpush1.msra.mxu0 0.0
    %171 = vmatprep.subr.mxu0 0.0
    %172 = vmatpush1.msra.mxu0 0.0
    %173 = vmatprep.subr.mxu0 0.0
    %174 = vmatpush1.msra.mxu0 0.0
    %175 = vmatprep.subr.mxu0 0.0
    %176 = vmatpush1.msra.mxu0 0.0
    %177 = vmatprep.subr.mxu0 0.0
    %178 = vmatpush1.msra.mxu0 0.0
    %179 = vmatprep.mubr.f32.mxu0 0.0
    %180 = vmatmul.mubr.f32.gmra.mrb[0].mxu0 %v62
    %v181 = vpop.f32.mrb[0].mxu0
    %v182 = vadd.f32 %v42, %v181
    %v183 = vpop.f32.mrb[0].mxu0
    %184 = vmatprep.mubr.f32.mxu0 0.0
    %185 = vmatmul.mubr.f32.gmra.mrb[0].mxu0 %v65
    %v186 = vpop.f32.mrb[0].mxu0
    %v187 = vadd.f32 %v43, %v186
    %v188 = vpop.f32.mrb[0].mxu0
    %189 = vmatprep.mubr.f32.mxu0 0.0
    %190 = vmatmul.mubr.f32.gmra.mrb[0].mxu0 %v68
    %v191 = vpop.f32.mrb[0].mxu0
    %v192 = vadd.f32 %v44, %v191
    %v193 = vpop.f32.mrb[0].mxu0
    %194 = vmatprep.mubr.f32.mxu0 0.0
    %195 = vmatmul.mubr.f32.gmra.mrb[0].mxu0 %v71
    %v196 = vpop.f32.mrb[0].mxu0
    %v197 = vadd.f32 %v45, %v196
    %v198 = vpop.f32.mrb[0].mxu0
    %199 = vmatprep.mubr.f32.mxu0 0.0
    %200 = vmatmul.mubr.f32.gmra.mrb[0].mxu0 %v74
    %v201 = vpop.f32.mrb[0].mxu0
    %v202 = vadd.f32 %v46, %v201
    %v203 = vpop.f32.mrb[0].mxu0
    %204 = vmatprep.mubr.f32.mxu0 0.0
    %205 = vmatmul.mubr.f32.gmra.mrb[0].mxu0 %v77
    %v206 = vpop.f32.mrb[0].mxu0
    %v207 = vadd.f32 %v47, %v206
    %v208 = vpop.f32.mrb[0].mxu0
    %209 = vmatprep.mubr.f32.mxu0 0.0
    %210 = vmatmul.mubr.f32.gmra.mrb[0].mxu0 %v80
    %v211 = vpop.f32.mrb[0].mxu0
    %v212 = vadd.f32 %v48, %v211
    %v213 = vpop.f32.mrb[0].mxu0
    %214 = vmatprep.mubr.f32.mxu0 0.0
    %215 = vmatmul.mubr.f32.gmra.mrb[0].mxu0 %v83
    %v216 = vpop.f32.mrb[0].mxu0
    %v217 = vadd.f32 %v49, %v216
    %v218 = vpop.f32.mrb[0].mxu0
    %219 = vmatprep.mubr.f32.mxu0 0.0
    %220 = vmatmul.mubr.f32.gmra.mrb[0].mxu0 %v86
    %v221 = vpop.f32.mrb[0].mxu0
    %v222 = vadd.f32 %v50, %v221
    %v223 = vpop.f32.mrb[0].mxu0
    %224 = vmatprep.mubr.f32.mxu0 0.0
    %225 = vmatmul.mubr.f32.gmra.mrb[0].mxu0 %v89
    %v226 = vpop.f32.mrb[0].mxu0
    %v227 = vadd.f32 %v51, %v226
    %v228 = vpop.f32.mrb[0].mxu0
    %229 = vmatprep.mubr.f32.mxu0 0.0
    %230 = vmatmul.mubr.f32.gmra.mrb[0].mxu0 %v92
    %v231 = vpop.f32.mrb[0].mxu0
    %v232 = vadd.f32 %v52, %v231
    %v233 = vpop.f32.mrb[0].mxu0
    %234 = vmatprep.mubr.f32.mxu0 0.0
    %235 = vmatmul.mubr.f32.gmra.mrb[0].mxu0 %v95
    %v236 = vpop.f32.mrb[0].mxu0
    %v237 = vadd.f32 %v53, %v236
    %v238 = vpop.f32.mrb[0].mxu0
    %239 = vmatprep.mubr.f32.mxu0 0.0
    %240 = vmatmul.mubr.f32.gmra.mrb[0].mxu0 %v98
    %v241 = vpop.f32.mrb[0].mxu0
    %v242 = vadd.f32 %v54, %v241
    %v243 = vpop.f32.mrb[0].mxu0
    %244 = vmatprep.mubr.f32.mxu0 0.0
    %245 = vmatmul.mubr.f32.gmra.mrb[0].mxu0 %v101
    %v246 = vpop.f32.mrb[0].mxu0
    %v247 = vadd.f32 %v55, %v246
    %v248 = vpop.f32.mrb[0].mxu0
    %249 = vmatprep.mubr.f32.mxu0 0.0
    %250 = vmatmul.mubr.f32.gmra.mrb[0].mxu0 %v104
    %v251 = vpop.f32.mrb[0].mxu0
    %v252 = vadd.f32 %v56, %v251
    %v253 = vpop.f32.mrb[0].mxu0
    %254 = vmatprep.mubr.f32.mxu0 0.0
    %255 = vmatmul.mubr.f32.gmra.mrb[0].mxu0 %v107
    %v256 = vpop.f32.mrb[0].mxu0
    %v257 = vadd.f32 %v57, %v256
    %v258 = vpop.f32.mrb[0].mxu0
    %259 = vmatprep.mubr.f32.mxu0 0.0
    %260 = vmatmul.mubr.f32.gmra.mrb[0].mxu0 %v110
    %v261 = vpop.f32.mrb[0].mxu0
    %v262 = vadd.f32 %v58, %v261
    %v263 = vpop.f32.mrb[0].mxu0
    %264 = vmatprep.mubr.f32.mxu0 0.0
    %265 = vmatmul.mubr.f32.gmra.mrb[0].mxu0 %v113
    %v266 = vpop.f32.mrb[0].mxu0
    %v267 = vadd.f32 %v59, %v266
    %v268 = vpop.f32.mrb[0].mxu0
    %269 = vdwg.mxu0
    %v270 = vmul.f32 %v182, 0.5
    %v271 = vmul.f32 %v187, 0.5
    %v272 = vmul.f32 %v192, 0.5
    %v273 = vmul.f32 %v197, 0.5
    %v274 = vmul.f32 %v202, 0.5
    %v275 = vmul.f32 %v207, 0.5
    %v276 = vtanh.pop %v270
    %v277 = vtanh.pop %v271
    %v278 = vtanh.pop %v272
    %v279 = vtanh.pop %v273
    %v280 = vtanh.pop %v274
    %v281 = vtanh.pop %v275
    %v282 = vmul.f32 %v276, 0.5
    %v283 = vmul.f32 %v277, 0.5
    %v284 = vmul.f32 %v278, 0.5
    %v285 = vmul.f32 %v279, 0.5
    %v286 = vmul.f32 %v280, 0.5
    %v287 = vmul.f32 %v281, 0.5
    %v288 = vadd.f32 %v282, 0.5
    %v289 = vadd.f32 %v283, 0.5
    %v290 = vadd.f32 %v284, 0.5
    %v291 = vadd.f32 %v285, 0.5
    %v292 = vadd.f32 %v286, 0.5
    %v293 = vadd.f32 %v287, 0.5
    %v294 = vmul.f32 %v212, 0.5
    %v295 = vmul.f32 %v217, 0.5
    %v296 = vmul.f32 %v222, 0.5
    %v297 = vmul.f32 %v227, 0.5
    %v298 = vmul.f32 %v232, 0.5
    %v299 = vmul.f32 %v237, 0.5
    %v300 = vtanh.pop %v294
    %v301 = vtanh.pop %v295
    %v302 = vtanh.pop %v296
    %v303 = vtanh.pop %v297
    %v304 = vtanh.pop %v298
    %v305 = vtanh.pop %v299
    %v306 = vmul.f32 %v300, 0.5
    %v307 = vmul.f32 %v301, 0.5
    %v308 = vmul.f32 %v302, 0.5
    %v309 = vmul.f32 %v303, 0.5
    %v310 = vmul.f32 %v304, 0.5
    %v311 = vmul.f32 %v305, 0.5
    %v312 = vadd.f32 %v306, 0.5
    %v313 = vadd.f32 %v307, 0.5
    %v314 = vadd.f32 %v308, 0.5
    %v315 = vadd.f32 %v309, 0.5
    %v316 = vadd.f32 %v310, 0.5
    %v317 = vadd.f32 %v311, 0.5
    %v318 = vmul.f32 %v312, %v18
    %v319 = vmul.f32 %v313, %v19
    %v320 = vmul.f32 %v314, %v20
    %v321 = vmul.f32 %v315, %v21
    %v322 = vmul.f32 %v316, %v22
    %v323 = vmul.f32 %v317, %v23
    %v324 = vld [vmem:[%s2] sm:$0xff]
    %v325 = vld [vmem:[%s2 + $0x8] sm:$0xff]
    %v326 = vld [vmem:[%s2 + $0x10] sm:$0xff]
    %v327 = vld [vmem:[%s2 + $0x18] sm:$0xff]
    %v328 = vld [vmem:[%s2 + $0x20] sm:$0xff]
    %v329 = vld [vmem:[%s2 + $0x28] sm:$0xff]
    %v331 = vsel %vm60, %v324, 0
    %v334 = vsel %vm60, %v325, 0
    %v337 = vsel %vm60, %v326, 0
    %v340 = vsel %vm60, %v327, 0
    %v343 = vsel %vm60, %v328, 0
    %v346 = vsel %vm60, %v329, 0
    %348 = vmatprep.subr.mxu0 0.0
    %349 = vmatpush1.msra.mxu0 %v318
    %350 = vmatprep.subr.mxu0 0.0
    %351 = vmatpush1.msra.mxu0 %v319
    %352 = vmatprep.subr.mxu0 0.0
    %353 = vmatpush1.msra.mxu0 %v320
    %354 = vmatprep.subr.mxu0 0.0
    %355 = vmatpush1.msra.mxu0 %v321
    %356 = vmatprep.subr.mxu0 0.0
    %357 = vmatpush1.msra.mxu0 %v322
    %358 = vmatprep.subr.mxu0 0.0
    %359 = vmatpush1.msra.mxu0 %v323
    %360 = vmatprep.subr.mxu0 0.0
    %361 = vmatpush1.msra.mxu0 0.0
    %362 = vmatprep.subr.mxu0 0.0
    %363 = vmatpush1.msra.mxu0 0.0
    %364 = vmatprep.subr.mxu0 0.0
    %365 = vmatpush1.msra.mxu0 0.0
    %366 = vmatprep.subr.mxu0 0.0
    %367 = vmatpush1.msra.mxu0 0.0
    %368 = vmatprep.subr.mxu0 0.0
    %369 = vmatpush1.msra.mxu0 0.0
    %370 = vmatprep.subr.mxu0 0.0
    %371 = vmatpush1.msra.mxu0 0.0
    %372 = vmatprep.subr.mxu0 0.0
    %373 = vmatpush1.msra.mxu0 0.0
    %374 = vmatprep.subr.mxu0 0.0
    %375 = vmatpush1.msra.mxu0 0.0
    %376 = vmatprep.subr.mxu0 0.0
    %377 = vmatpush1.msra.mxu0 0.0
    %378 = vmatprep.subr.mxu0 0.0
    %379 = vmatpush1.msra.mxu0 0.0
    %380 = vmatprep.subr.mxu0 0.0
    %381 = vmatpush1.msra.mxu0 0.0
    %382 = vmatprep.subr.mxu0 0.0
    %383 = vmatpush1.msra.mxu0 0.0
    %384 = vmatprep.subr.mxu0 0.0
    %385 = vmatpush1.msra.mxu0 0.0
    %386 = vmatprep.subr.mxu0 0.0
    %387 = vmatpush1.msra.mxu0 0.0
    %388 = vmatprep.subr.mxu0 0.0
    %389 = vmatpush1.msra.mxu0 0.0
    %390 = vmatprep.subr.mxu0 0.0
    %391 = vmatpush1.msra.mxu0 0.0
    %392 = vmatprep.subr.mxu0 0.0
    %393 = vmatpush1.msra.mxu0 0.0
    %394 = vmatprep.subr.mxu0 0.0
    %395 = vmatpush1.msra.mxu0 0.0
    %396 = vmatprep.subr.mxu0 0.0
    %397 = vmatpush1.msra.mxu0 0.0
    %398 = vmatprep.subr.mxu0 0.0
    %399 = vmatpush1.msra.mxu0 0.0
    %400 = vmatprep.subr.mxu0 0.0
    %401 = vmatpush1.msra.mxu0 0.0
    %402 = vmatprep.subr.mxu0 0.0
    %403 = vmatpush1.msra.mxu0 0.0
    %404 = vmatprep.subr.mxu0 0.0
    %405 = vmatpush1.msra.mxu0 0.0
    %406 = vmatprep.subr.mxu0 0.0
    %407 = vmatpush1.msra.mxu0 0.0
    %408 = vmatprep.subr.mxu0 0.0
    %409 = vmatpush1.msra.mxu0 0.0
    %410 = vmatprep.subr.mxu0 0.0
    %411 = vmatpush1.msra.mxu0 0.0
    %412 = vmatprep.mubr.f32.mxu0 0.0
    %413 = vmatmul.mubr.f32.gmra.mrb[0].mxu0 %v331
    %v414 = vpop.f32.mrb[0].mxu0
    %v415 = vadd.f32 0.0, %v414
    %v416 = vpop.f32.mrb[0].mxu0
    %417 = vmatprep.mubr.f32.mxu0 0.0
    %418 = vmatmul.mubr.f32.gmra.mrb[0].mxu0 %v334
    %v419 = vpop.f32.mrb[0].mxu0
    %v420 = vadd.f32 0.0, %v419
    %v421 = vpop.f32.mrb[0].mxu0
    %422 = vmatprep.mubr.f32.mxu0 0.0
    %423 = vmatmul.mubr.f32.gmra.mrb[0].mxu0 %v337
    %v424 = vpop.f32.mrb[0].mxu0
    %v425 = vadd.f32 0.0, %v424
    %v426 = vpop.f32.mrb[0].mxu0
    %427 = vmatprep.mubr.f32.mxu0 0.0
    %428 = vmatmul.mubr.f32.gmra.mrb[0].mxu0 %v340
    %v429 = vpop.f32.mrb[0].mxu0
    %v430 = vadd.f32 0.0, %v429
    %v431 = vpop.f32.mrb[0].mxu0
    %432 = vmatprep.mubr.f32.mxu0 0.0
    %433 = vmatmul.mubr.f32.gmra.mrb[0].mxu0 %v343
    %v434 = vpop.f32.mrb[0].mxu0
    %v435 = vadd.f32 0.0, %v434
    %v436 = vpop.f32.mrb[0].mxu0
    %437 = vmatprep.mubr.f32.mxu0 0.0
    %438 = vmatmul.mubr.f32.gmra.mrb[0].mxu0 %v346
    %v439 = vpop.f32.mrb[0].mxu0
    %v440 = vadd.f32 0.0, %v439
    %v441 = vpop.f32.mrb[0].mxu0
    %442 = vdwg.mxu0
    %v443 = vadd.f32 %v242, %v415
    %v444 = vadd.f32 %v247, %v420
    %v445 = vadd.f32 %v252, %v425
    %v446 = vadd.f32 %v257, %v430
    %v447 = vadd.f32 %v262, %v435
    %v448 = vadd.f32 %v267, %v440
    %v449 = vtanh.pop %v443
    %v450 = vtanh.pop %v444
    %v451 = vtanh.pop %v445
    %v452 = vtanh.pop %v446
    %v453 = vtanh.pop %v447
    %v454 = vtanh.pop %v448
    %v455 = vsub.f32 %v449, %v18
    %v456 = vsub.f32 %v450, %v19
    %v457 = vsub.f32 %v451, %v20
    %v458 = vsub.f32 %v452, %v21
    %v459 = vsub.f32 %v453, %v22
    %v460 = vsub.f32 %v454, %v23
    %v461 = vmul.f32 %v288, %v455
    %v462 = vmul.f32 %v289, %v456
    %v463 = vmul.f32 %v290, %v457
    %v464 = vmul.f32 %v291, %v458
    %v465 = vmul.f32 %v292, %v459
    %v466 = vmul.f32 %v293, %v460
    %v467 = vadd.f32 %v18, %v461
    %v468 = vadd.f32 %v19, %v462
    %v469 = vadd.f32 %v20, %v463
    %v470 = vadd.f32 %v21, %v464
    %v471 = vadd.f32 %v22, %v465
    %v472 = vadd.f32 %v23, %v466
    %473 = vst [vmem:[#allocation2] sm:$0xff] %v467
    %474 = vst [vmem:[#allocation2 + $0x8] sm:$0xff] %v468
    %475 = vst [vmem:[#allocation2 + $0x10] sm:$0xff] %v469
    %476 = vst [vmem:[#allocation2 + $0x18] sm:$0xff] %v470
    %477 = vst [vmem:[#allocation2 + $0x20] sm:$0xff] %v471
    %478 = vst [vmem:[#allocation2 + $0x28] sm:$0xff] %v472
    // Predicated region
    $region18: #{tpu_custom_call.1} parent=1 // pred_check
      _
    $region19: #{tpu_custom_call.1} parent=1 // pred_check_branch
      %480 = sbr.rel (0) target = $region21
    $region20: #{tpu_custom_call.1} parent=1 // pred_region
      %s482 = ssub.s32 768, 768
      %483 = vsyncadd [#allocation3], %s482
      %s484 = sshll.u32 [#allocation2], 4
      %s485 = int_to_ptr.vmem [resolvable:$true] %s484
      %490 = dma.vmem_to_hbm [thread:$0]  %s485, 768, %s4, [#allocation3], 128, 128, 8
    $region21: #{tpu_custom_call.1} parent=1 // pred_fallthru
      _
    // Predicated region
    $region22: #{tpu_custom_call.1} parent=1 // pred_check
      _
    $region23: #{tpu_custom_call.1} parent=1 // pred_check_branch
      %492 = sbr.rel (0) target = $region25
    $region24: #{tpu_custom_call.1} parent=1 // pred_region
      %493 = dma.done [#allocation3], 768
    $region25: #{tpu_custom_call.1} parent=1 // pred_fallthru
      _
    %494 = vsyncpa [#allocation3], 1

</llo_original>
